<compile_context>
chip_gen: v5e
topology: v5e:2x2
jax: 0.10.0
libtpu: 0.0.40
codegen_flags: <defaults>
</compile_context>

<pallas_src>
import functools
import math

import jax
import jax.numpy as jnp
from jax.experimental import pallas as pl
from jax.experimental.pallas import tpu as pltpu

LN_EPS = 1e-5  # PyTorch nn.LayerNorm default
NEG_INF = -1e30

_SINGLE_BUFFER_WEIGHTS = True  # flipped off if this build rejects pl.Buffered(1)


# ----------------------------- in-kernel helpers -----------------------------

def _layernorm(x, g, b):
    mu = jnp.mean(x, axis=-1, keepdims=True)
    var = jnp.mean((x - mu) ** 2, axis=-1, keepdims=True)
    return (x - mu) * jax.lax.rsqrt(var + LN_EPS) * g + b


def _erf(x):
    # Abramowitz & Stegun 7.1.26 rational approximation, |err| < 1.5e-7
    # (~float32 eps) -- surrogate for exact erf so exact GELU lowers on Mosaic.
    a1, a2, a3, a4, a5 = 0.254829592, -0.284496736, 1.421413741, -1.453152027, 1.061405429
    p = 0.3275911
    z = jnp.abs(x)
    t = pl.reciprocal(1.0 + p * z, approx=True)          # EUP slot (VALU-free)
    poly = ((((a5 * t + a4) * t + a3) * t + a2) * t + a1) * t
    r = 1.0 - poly * jnp.exp(-z * z)
    return jnp.where(x >= 0.0, r, -r)                    # single select for sign


def _gelu(x):
    # PyTorch nn.GELU default is exact (erf-based) GELU.
    return 0.5 * x * (1.0 + _erf(x * (1.0 / math.sqrt(2.0))))


# --------------------------------- kernels -----------------------------------

def embed_kernel(x_ref, w_ref, add_ref, o_ref):
    # x:   (Bt, S, patch_dim) bf16  (cls / pad rows are zero)
    # w:   (patch_dim, D)     bf16  (resident)
    # add: (S, D)             f32   (resident; [cls+pos | pos+bias | 0] rows)
    Bt, S, P = x_ref.shape
    D = w_ref.shape[1]
    y = jnp.dot(x_ref[...].reshape(Bt * S, P), w_ref[...],
                preferred_element_type=jnp.float32)
    y = y.reshape(Bt, S, D) + add_ref[...][None]
    o_ref[...] = y.astype(o_ref.dtype)


def block_kernel(num_heads, seq_len,
                 x_ref, ln1_g, ln1_b, wqkv, bqkv, wo, bo,
                 ln2_g, ln2_b, w1, b1, w2, b2, o_ref):
    # One pre-norm transformer block for Bt batch elements per grid step.
    xb = x_ref[...].astype(jnp.float32)          # (Bt, S, D) residual stream
    Bt, S, D = xb.shape
    H = num_heads
    dh = D // H
    scale = 1.0 / math.sqrt(dh)

    x2 = xb.reshape(Bt * S, D)                   # flatten -> big MXU M dim

    # --- multi-head self-attention -----------------------------------------
    n2 = _layernorm(x2, ln1_g[...], ln1_b[...]).astype(jnp.bfloat16)

    # q/k/v from stacked weights -> split on leading axis (no lane slicing)
    q = jnp.dot(n2, wqkv[0], preferred_element_type=jnp.float32) + bqkv[0]
    k = jnp.dot(n2, wqkv[1], preferred_element_type=jnp.float32) + bqkv[1]
    v = jnp.dot(n2, wqkv[2], preferred_element_type=jnp.float32) + bqkv[2]

    qh = (q * scale).astype(jnp.bfloat16).reshape(Bt, S, H, dh)
    kh = k.astype(jnp.bfloat16).reshape(Bt, S, H, dh)
    vh = v.astype(jnp.bfloat16).reshape(Bt, S, H, dh)

    # batched (Bt, H) matmuls -- single dot_general each, no per-head loop.
    # TODO(synk): for production dh=64 on v6e/v7x, group >=2 heads per MXU pass
    # (or block-diagonal masking when D<=128) to fill the 128-lane contraction.
    scores = jnp.einsum('bqhd,bkhd->bhqk', qh, kh,
                        preferred_element_type=jnp.float32)   # (Bt, H, S, S)

    # mask padded key columns (sequence padded up to a multiple of 8)
    key_mask = jax.lax.broadcasted_iota(jnp.int32, (1, 1, 1, S), 3) < seq_len
    scores = jnp.where(key_mask, scores, NEG_INF)

    m = jnp.max(scores, axis=-1, keepdims=True)
    p = jnp.exp(scores - m)
    denom = jnp.sum(p, axis=-1, keepdims=True)
    p = p * pl.reciprocal(denom, approx=True)                 # EUP slot

    ctx = jnp.einsum('bhqk,bkhd->bqhd', p.astype(jnp.bfloat16), vh,
                     preferred_element_type=jnp.float32)      # (Bt, S, H, dh)
    attn = jnp.dot(ctx.reshape(Bt * S, D).astype(jnp.bfloat16), wo[...],
                   preferred_element_type=jnp.float32) + bo[...]

    x2 = x2 + attn

    # --- MLP ----------------------------------------------------------------
    # TODO(synk): for production ViT on v7x (64 MiB VMEM), K-tile w1/w2
    # (emit_pipeline or an extra "arbitrary" grid axis with an f32 accumulator)
    # if the block weights still do not fit after single-buffering.
    n2 = _layernorm(x2, ln2_g[...], ln2_b[...]).astype(jnp.bfloat16)
    h1 = jnp.dot(n2, w1[...], preferred_element_type=jnp.float32) + b1[...]
    h1 = _gelu(h1)
    h2 = jnp.dot(h1.astype(jnp.bfloat16), w2[...],
                 preferred_element_type=jnp.float32) + b2[...]

    y = (x2 + h2).reshape(Bt, S, D)

    # zero padded rows so garbage never propagates through the residual stream
    row_ids = jax.lax.broadcasted_iota(jnp.int32, (S, D), 0)
    keep = (row_ids < seq_len)[None, :, :]
    o_ref[...] = jnp.where(keep, y, 0.0).astype(o_ref.dtype)


def pool_kernel(x_ref, g_ref, b_ref, o_ref):
    # fused final LayerNorm + CLS pooling: only row 0 is normalized / written.
    cls = x_ref[0, 0:1, :].astype(jnp.float32)                # (1, D)
    o_ref[0] = _layernorm(cls, g_ref[...], b_ref[...])


# ------------------------------ pallas wrappers -------------------------------

@functools.lru_cache(maxsize=None)
def _vmem_limit_bytes():
    # v5e/v6e have 128 MiB physical VMEM -> allow up to 96 MiB;
    # v7x has 64 MiB -> this caps around 48 MiB.
    try:
        cap = int(pltpu.get_tpu_info().vmem_capacity_bytes)
    except Exception:
        cap = 128 * 1024 * 1024
    return int(min(96 * 1024 * 1024, cap * 3 // 4))


def _resident_spec(shape, single_buffer):
    # Constant-index (weight) operand. Single-buffering halves its VMEM
    # footprint -- critical on v7x where ViT-B block weights are ~14 MB bf16.
    n = len(shape)
    index_map = lambda i: (0,) * n
    if single_buffer:
        return pl.BlockSpec(shape, index_map, pipeline_mode=pl.Buffered(1))
    return pl.BlockSpec(shape, index_map)


def _pick_batch_tile(batch, s_pad, target_rows=256, min_rows=128):
    # Largest divisor of `batch` whose Bt*S row count stays within one MXU M
    # pass (256 on v6e/v7x); prefer >=2 grid steps (v7x has 2 TensorCores)
    # when that still keeps the matmul M dimension reasonably large.
    bt = max(1, min(batch, target_rows // s_pad))
    while batch % bt:
        bt -= 1
    if batch // bt < 2:
        half = bt // 2
        while half >= 1 and (batch % half or half * s_pad < min_rows):
            half -= 1
        if half >= 1:
            bt = half
    return bt


def pallas_patch_embed(rows, w_t, add, bt):
    # rows: (B, s_pad, patch_dim) bf16; w_t: (patch_dim, D) bf16; add: (s_pad, D) f32
    B, S, P = rows.shape
    D = w_t.shape[1]
    return pl.pallas_call(
        embed_kernel,
        out_shape=jax.ShapeDtypeStruct((B, S, D), jnp.bfloat16),
        grid=(B // bt,),
        in_specs=[pl.BlockSpec((bt, S, P), lambda i: (i, 0, 0)),
                  pl.BlockSpec((P, D), lambda i: (0, 0)),
                  pl.BlockSpec((S, D), lambda i: (0, 0))],
        out_specs=pl.BlockSpec((bt, S, D), lambda i: (i, 0, 0)),
        compiler_params=pltpu.CompilerParams(
            dimension_semantics=("parallel",),
            vmem_limit_bytes=_vmem_limit_bytes()),
    )(rows, w_t, add)


def pallas_transformer_block(x, p, heads, seq_len, bt):
    global _SINGLE_BUFFER_WEIGHTS
    B, S, D = x.shape

    args = [x,
            p["ln1_g"], p["ln1_b"], p["wqkv"], p["bqkv"], p["wo"], p["bo"],
            p["ln2_g"], p["ln2_b"], p["w1"], p["b1"], p["w2"], p["b2"]]

    def run(single_buffer):
        in_specs = [pl.BlockSpec((bt, S, D), lambda i: (i, 0, 0))]
        in_specs += [_resident_spec(a.shape, single_buffer) for a in args[1:]]
        return pl.pallas_call(
            functools.partial(block_kernel, heads, seq_len),
            out_shape=jax.ShapeDtypeStruct((B, S, D), x.dtype),   # bf16 residual
            grid=(B // bt,),
            in_specs=in_specs,
            out_specs=pl.BlockSpec((bt, S, D), lambda i: (i, 0, 0)),
            compiler_params=pltpu.CompilerParams(
                dimension_semantics=("parallel",),
                vmem_limit_bytes=_vmem_limit_bytes()),
        )(*args)

    if _SINGLE_BUFFER_WEIGHTS:
        try:
            return run(True)
        except Exception:                     # pl.Buffered(1) not supported here
            _SINGLE_BUFFER_WEIGHTS = False
    return run(False)


def pallas_ln_cls_pool(x, g, b):
    # fused final LayerNorm + CLS pooling (reads only the first 8 rows).
    B, S, D = x.shape
    out = pl.pallas_call(
        pool_kernel,
        out_shape=jax.ShapeDtypeStruct((B, 1, D), jnp.float32),
        grid=(B,),
        in_specs=[pl.BlockSpec((1, 8, D), lambda i: (i, 0, 0)),
                  pl.BlockSpec((1, D), lambda i: (0, 0)),
                  pl.BlockSpec((1, D), lambda i: (0, 0))],
        out_specs=pl.BlockSpec((1, 1, D), lambda i: (i, 0, 0)),
        compiler_params=pltpu.CompilerParams(dimension_semantics=("parallel",)),
    )(x, g, b)
    return out[:, 0, :]


# --------------------------- parameters & packing ------------------------------

def init_params(key, *, image_size, patch_size, dim, depth, heads, mlp_dim):
    num_patches = (image_size // patch_size) ** 2
    patch_dim = 3 * patch_size * patch_size
    keys = jax.random.split(key, 4 + depth)

    def nrm(k, shape, scale=0.02):
        return (scale * jax.random.normal(k, shape)).astype(jnp.float32)

    params = {
        "patch_w": nrm(keys[0], (dim, patch_dim)),
        "patch_b": jnp.zeros((dim,), jnp.float32),
        "cls_token": nrm(keys[1], (1, 1, dim), 1.0),
        "pos_embed": nrm(keys[2], (1, num_patches + 1, dim), 1.0),
        "final_g": jnp.ones((dim,), jnp.float32),
        "final_b": jnp.zeros((dim,), jnp.float32),
        "blocks": [],
    }
    for d in range(depth):
        bk = jax.random.split(keys[4 + d], 4)
        params["blocks"].append({
            "ln1_g": jnp.ones((dim,), jnp.float32), "ln1_b": jnp.zeros((dim,), jnp.float32),
            "in_w": nrm(bk[0], (3 * dim, dim)), "in_b": jnp.zeros((3 * dim,), jnp.float32),
            "out_w": nrm(bk[1], (dim, dim)), "out_b": jnp.zeros((dim,), jnp.float32),
            "ln2_g": jnp.ones((dim,), jnp.float32), "ln2_b": jnp.zeros((dim,), jnp.float32),
            "w1": nrm(bk[2], (mlp_dim, dim)), "b1": jnp.zeros((mlp_dim,), jnp.float32),
            "w2": nrm(bk[3], (dim, mlp_dim)), "b2": jnp.zeros((dim,), jnp.float32),
        })
    return params


def prepare_params(params):
    # One-time pack/cast of all weights (done OUTSIDE the forward so no
    # transpose+cast XLA ops run per layer per forward).
    D = params["patch_w"].shape[0]
    n_tok = params["pos_embed"].shape[1]              # num_patches + 1
    s_pad = ((n_tok + 7) // 8) * 8                    # pad seq to sublane multiple

    pos = params["pos_embed"][0]                      # (n_tok, D)
    add = jnp.zeros((s_pad, D), jnp.float32)
    add = add.at[0].set(params["cls_token"][0, 0] + pos[0])
    add = add.at[1:n_tok].set(pos[1:] + params["patch_b"][None, :])

    prep = {
        "patch_w_t": params["patch_w"].T.astype(jnp.bfloat16),   # (patch_dim, D)
        "embed_add": add,                                        # (s_pad, D)
        "seq_len": int(n_tok),
        "s_pad": int(s_pad),
        "final_g": params["final_g"].reshape(1, D),
        "final_b": params["final_b"].reshape(1, D),
        "blocks": [],
    }
    for p in params["blocks"]:
        mlp_dim = p["w1"].shape[0]
        prep["blocks"].append({
            "ln1_g": p["ln1_g"].reshape(1, D), "ln1_b": p["ln1_b"].reshape(1, D),
            "wqkv": jnp.transpose(p["in_w"].reshape(3, D, D), (0, 2, 1)).astype(jnp.bfloat16),
            "bqkv": p["in_b"].reshape(3, 1, D),
            "wo": p["out_w"].T.astype(jnp.bfloat16), "bo": p["out_b"].reshape(1, D),
            "ln2_g": p["ln2_g"].reshape(1, D), "ln2_b": p["ln2_b"].reshape(1, D),
            "w1": p["w1"].T.astype(jnp.bfloat16), "b1": p["b1"].reshape(1, mlp_dim),
            "w2": p["w2"].T.astype(jnp.bfloat16), "b2": p["b2"].reshape(1, D),
        })
    return jax.tree_util.tree_map(lambda a: a, prep)


# --------------------------------- the model ----------------------------------

def custom_vit_forward(prep, pixel_values, *, patch_size, heads):
    B, C, H, W = pixel_values.shape
    ph = pw = patch_size
    nH, nW = H // ph, W // pw
    patch_dim = C * ph * pw
    N = nH * nW
    seq_len = prep["seq_len"]
    s_pad = prep["s_pad"]
    assert seq_len == N + 1

    # patchify: matches torch unfold(2).unfold(3).permute(0,2,3,1,4,5).view(...)
    patches = pixel_values.reshape(B, C, nH, ph, nW, pw)
    patches = patches.transpose(0, 2, 4, 1, 3, 5).reshape(B, N, patch_dim)

    # rows: [zero cls row | patches | zero pad rows]; cls/pad row contents come
    # entirely from the fused resident `embed_add` term in the embed kernel.
    rows = jnp.pad(patches, ((0, 0), (1, s_pad - 1 - N), (0, 0))).astype(jnp.bfloat16)

    bt = _pick_batch_tile(B, s_pad)
    x = pallas_patch_embed(rows, prep["patch_w_t"], prep["embed_add"], bt)
    # TODO(synk): nn.Dropout layers are identity here (inference mode).

    for blk in prep["blocks"]:
        x = pallas_transformer_block(x, blk, heads, seq_len, bt)

    return pallas_ln_cls_pool(x, prep["final_g"], prep["final_b"])  # pooler_output


# ----------------------------------- main --------------------------------------

if __name__ == "__main__":
    # small config consistent with the module's structure
    IMAGE_SIZE, PATCH_SIZE = 32, 8
    DIM, DEPTH, HEADS, MLP_DIM = 32, 2, 4, 64
    B = 2

    key = jax.random.PRNGKey(0)
    k_params, k_input = jax.random.split(key)

    params = init_params(k_params, image_size=IMAGE_SIZE, patch_size=PATCH_SIZE,
                         dim=DIM, depth=DEPTH, heads=HEADS, mlp_dim=MLP_DIM)
    prep = prepare_params(params)

    pixel_values = jax.random.normal(k_input, (B, 3, IMAGE_SIZE, IMAGE_SIZE),
                                     dtype=jnp.float32)                     # NCHW

    pooled = custom_vit_forward(prep, pixel_values,
                                patch_size=PATCH_SIZE, heads=HEADS)
    pooled = jax.block_until_ready(pooled)
    assert pooled.shape == (B, DIM)
    print("KERNEL_OK")
</pallas_src>

<mosaic_0001>
module attributes {stable_mosaic.version = 11 : i64} {
  func.func @embed_kernel(%arg0: i32, %arg1: memref<2x24x192xbf16, #tpu.memory_space<vmem>>, %arg2: memref<192x32xbf16, #tpu.memory_space<vmem>>, %arg3: memref<24x32xf32, #tpu.memory_space<vmem>>, %arg4: memref<2x24x32xbf16, #tpu.memory_space<vmem>>) attributes {dimension_semantics = [#tpu.dimension_semantics<parallel>], iteration_bounds = array<i64: 1>, scalar_prefetch = 0 : i64, scratch_operands = 0 : i64, tpu.core_type = #tpu.core_type<tc>, window_params = [{transform_indices = @transform_0, window_bounds = array<i64: 2, 24, 192>}, {pipeline_mode = #tpu.pipeline_mode<synchronous>, transform_indices = @transform_1, window_bounds = array<i64: 192, 32>}, {pipeline_mode = #tpu.pipeline_mode<synchronous>, transform_indices = @transform_2, window_bounds = array<i64: 24, 32>}, {transform_indices = @transform_3, window_bounds = array<i64: 2, 24, 32>}]} {
    %c0 = arith.constant 0 : index
    %c0_0 = arith.constant 0 : index
    %c0_1 = arith.constant 0 : index
    %0 = vector.load %arg1[%c0, %c0_0, %c0_1] : memref<2x24x192xbf16, #tpu.memory_space<vmem>>, vector<2x24x192xbf16>
    %1 = vector.shape_cast %0 : vector<2x24x192xbf16> to vector<48x192xbf16>
    %c0_2 = arith.constant 0 : index
    %c0_3 = arith.constant 0 : index
    %2 = vector.load %arg2[%c0_2, %c0_3] : memref<192x32xbf16, #tpu.memory_space<vmem>>, vector<192x32xbf16>
    %cst = arith.constant dense<0.000000e+00> : vector<48x32xf32>
    %3 = tpu.matmul %1, %2, %cst {dimension_numbers = #tpu.dot_dimension_numbers<[1], [0], [0], [1], [0, 0, 1, 1], [], []>} : vector<48x192xbf16>, vector<192x32xbf16>, vector<48x32xf32> -> vector<48x32xf32>
    %4 = vector.shape_cast %3 : vector<48x32xf32> to vector<2x24x32xf32>
    %c0_4 = arith.constant 0 : index
    %c0_5 = arith.constant 0 : index
    %5 = vector.load %arg3[%c0_4, %c0_5] : memref<24x32xf32, #tpu.memory_space<vmem>>, vector<24x32xf32>
    %6 = vector.shape_cast %5 : vector<24x32xf32> to vector<1x24x32xf32>
    %7 = vector.broadcast %6 : vector<1x24x32xf32> to vector<2x24x32xf32>
    %8 = arith.addf %4, %7 : vector<2x24x32xf32>
    %9 = arith.truncf %8 : vector<2x24x32xf32> to vector<2x24x32xbf16>
    %c0_6 = arith.constant 0 : index
    %c0_7 = arith.constant 0 : index
    %c0_8 = arith.constant 0 : index
    %10 = vector.load %arg4[%c0_6, %c0_7, %c0_8] : memref<2x24x32xbf16, #tpu.memory_space<vmem>>, vector<2x24x32xbf16>
    tpu.vector_store %arg4[%c0_6, %c0_7, %c0_8], %9 {strides = array<i32>} : memref<2x24x32xbf16, #tpu.memory_space<vmem>>, vector<2x24x32xbf16>,
    return
  }
  func.func @transform_0(%arg0: i32) -> (i32, i32, i32) {
    %c0_i32 = arith.constant 0 : i32
    %c0_i32_0 = arith.constant 0 : i32
    %c0_i32_1 = arith.constant 0 : i32
    return %arg0, %c0_i32, %c0_i32_0 : i32, i32, i32
  }
  func.func @transform_1(%arg0: i32) -> (i32, i32) {
    %c0_i32 = arith.constant 0 : i32
    %c0_i32_0 = arith.constant 0 : i32
    %c0_i32_1 = arith.constant 0 : i32
    return %c0_i32, %c0_i32_0 : i32, i32
  }
  func.func @transform_2(%arg0: i32) -> (i32, i32) {
    %c0_i32 = arith.constant 0 : i32
    %c0_i32_0 = arith.constant 0 : i32
    %c0_i32_1 = arith.constant 0 : i32
    return %c0_i32, %c0_i32_0 : i32, i32
  }
  func.func @transform_3(%arg0: i32) -> (i32, i32, i32) {
    %c0_i32 = arith.constant 0 : i32
    %c0_i32_0 = arith.constant 0 : i32
    %c0_i32_1 = arith.constant 0 : i32
    return %arg0, %c0_i32, %c0_i32_0 : i32, i32, i32
  }
}

</mosaic_0001>

<llo_original>
// kernel: tpu_custom_call.1
$region0: #{tpu_custom_call.1}
  #allocation0 [shape = 'u32[]', space=smem, size = 0x4, offset = 0x4, fixed_abs, tag = 'smem constant byte address 0x4 - core index']
  #allocation1 [shape = 'u32[72,128]{1,0:T(1,128)}', space=vmem, size = 0x9000, scoped, tag = 'internal scratch']
  %s0 = inlined_call_operand.vmem [shape: bf16[2,24,192], index: 0, kind: input, shape index: {}]
  %s1 = inlined_call_operand.vmem [shape: bf16[192,32], index: 1, kind: input, shape index: {}]
  %s2 = inlined_call_operand.vmem [shape: f32[24,32], index: 2, kind: input, shape index: {}]
  %s3 = inlined_call_operand.hbm [shape: bf16[2,24,32], index: 3, kind: output, shape index: {}]
  %s4 = sld [smem:[#allocation0]]
  $region22: #{tpu_custom_call.1} parent=0
    _
  %s6 = ssub.s32 1, %s4
  %s7 = scalar_select 0, %s6, %s4
  $region1: #{tpu_custom_call.1} parent=0
    #allocation2 [shape = 'u8[12288]{0}', space=vmem, size = 0x3000, scoped, tag = 'output window, operand 0, single buffered']
    #allocation3 [shape = 's32[1]{0}', space=sflag, size = 0x4, scoped, tag = 'scoped memory for tpu_custom_call.1']
    %8 = vsyncpa [#allocation3], 0
    // Predicated region
    $region2: #{tpu_custom_call.1} parent=1 // pred_check
      _
    $region3: #{tpu_custom_call.1} parent=1 // pred_check_branch
      %10 = sbr.rel (0) target = $region5
    $region4: #{tpu_custom_call.1} parent=1 // pred_region
      _
    $region5: #{tpu_custom_call.1} parent=1 // pred_fallthru
      _
    // Predicated region
    $region6: #{tpu_custom_call.1} parent=1 // pred_check
      _
    $region7: #{tpu_custom_call.1} parent=1 // pred_check_branch
      %12 = sbr.rel (0) target = $region9
    $region8: #{tpu_custom_call.1} parent=1 // pred_region
      _
    $region9: #{tpu_custom_call.1} parent=1 // pred_fallthru
      _
    // Predicated region
    $region10: #{tpu_custom_call.1} parent=1 // pred_check
      _
    $region11: #{tpu_custom_call.1} parent=1 // pred_check_branch
      %14 = sbr.rel (0) target = $region13
    $region12: #{tpu_custom_call.1} parent=1 // pred_region
      _
    $region13: #{tpu_custom_call.1} parent=1 // pred_fallthru
      _
    %v16 = vld [vmem:[%s0] sm:$0xff]
    %v17 = vld [vmem:[%s0 + $0x8] sm:$0xff]
    %v18 = vld [vmem:[%s0 + $0x10] sm:$0xff]
    %v19 = vld [vmem:[%s0 + $0x18] sm:$0xff]
    %v20 = vld [vmem:[%s0 + $0x20] sm:$0xff]
    %v21 = vld [vmem:[%s0 + $0x28] sm:$0xff]
    %v22 = vld [vmem:[%s1] sm:$0xf]
    %v23 = vld [vmem:[%s1 + $0x4] sm:$0xf]
    %v24 = vld [vmem:[%s1 + $0x8] sm:$0xf]
    %v25 = vld [vmem:[%s1 + $0xc] sm:$0xf]
    %v26 = vld [vmem:[%s1 + $0x10] sm:$0xf]
    %v27 = vld [vmem:[%s1 + $0x14] sm:$0xf]
    %v28 = vld [vmem:[%s1 + $0x18] sm:$0xf]
    %v29 = vld [vmem:[%s1 + $0x1c] sm:$0xf]
    %v30 = vld [vmem:[%s1 + $0x20] sm:$0xf]
    %v31 = vld [vmem:[%s1 + $0x24] sm:$0xf]
    %v32 = vld [vmem:[%s1 + $0x28] sm:$0xf]
    %v33 = vld [vmem:[%s1 + $0x2c] sm:$0xf]
    %v34 = vld [vmem:[%s1 + $0x30] sm:$0xf]
    %v35 = vld [vmem:[%s1 + $0x34] sm:$0xf]
    %v36 = vld [vmem:[%s1 + $0x38] sm:$0xf]
    %v37 = vld [vmem:[%s1 + $0x3c] sm:$0xf]
    %v38 = vld [vmem:[%s1 + $0x40] sm:$0xf]
    %v39 = vld [vmem:[%s1 + $0x44] sm:$0xf]
    %v40 = vld [vmem:[%s1 + $0x48] sm:$0xf]
    %v41 = vld [vmem:[%s1 + $0x4c] sm:$0xf]
    %v42 = vld [vmem:[%s1 + $0x50] sm:$0xf]
    %v43 = vld [vmem:[%s1 + $0x54] sm:$0xf]
    %v44 = vld [vmem:[%s1 + $0x58] sm:$0xf]
    %v45 = vld [vmem:[%s1 + $0x5c] sm:$0xf]
    %v52 = vunpack.c.l.b16 %v16
    %v53 = vunpack.c.h.b16 %v16
    %v54 = vunpack.c.l.b16 %v17
    %v55 = vunpack.c.h.b16 %v17
    %v56 = vunpack.c.l.b16 %v18
    %v57 = vunpack.c.h.b16 %v18
    %v58 = vunpack.c.l.b16 %v19
    %v59 = vunpack.c.h.b16 %v19
    %v60 = vunpack.c.l.b16 %v20
    %v61 = vunpack.c.h.b16 %v20
    %v62 = vunpack.c.l.b16 %v21
    %v63 = vunpack.c.h.b16 %v21
    %v64 = vpack.c.b16 %v54, %v52
    %v65 = vpack.c.b16 %v55, %v53
    %v66 = vpack.c.b16 %v58, %v56
    %v67 = vpack.c.b16 %v59, %v57
    %v68 = vpack.c.b16 %v62, %v60
    %v69 = vpack.c.b16 %v63, %v61
    %v97 = vunpack.c.l.b16 %v22
    %v98 = vunpack.c.l.b16 %v23
    %v99 = vunpack.c.l.b16 %v24
    %v100 = vunpack.c.l.b16 %v25
    %v101 = vunpack.c.l.b16 %v26
    %v102 = vunpack.c.l.b16 %v27
    %v103 = vunpack.c.l.b16 %v28
    %v104 = vunpack.c.l.b16 %v29
    %v105 = vunpack.c.l.b16 %v30
    %v106 = vunpack.c.l.b16 %v31
    %v107 = vunpack.c.l.b16 %v32
    %v108 = vunpack.c.l.b16 %v33
    %v109 = vunpack.c.l.b16 %v34
    %v110 = vunpack.c.l.b16 %v35
    %v111 = vunpack.c.l.b16 %v36
    %v112 = vunpack.c.l.b16 %v37
    %v113 = vunpack.c.l.b16 %v38
    %v114 = vunpack.c.l.b16 %v39
    %v115 = vunpack.c.l.b16 %v40
    %v116 = vunpack.c.l.b16 %v41
    %v117 = vunpack.c.l.b16 %v42
    %v118 = vunpack.c.l.b16 %v43
    %v119 = vunpack.c.l.b16 %v44
    %v120 = vunpack.c.l.b16 %v45
    %v121 = vpack.c.b16 %v98, %v97
    %v122 = vpack.c.b16 %v100, %v99
    %v123 = vpack.c.b16 %v102, %v101
    %v124 = vpack.c.b16 %v104, %v103
    %v125 = vpack.c.b16 %v106, %v105
    %v126 = vpack.c.b16 %v108, %v107
    %v127 = vpack.c.b16 %v110, %v109
    %v128 = vpack.c.b16 %v112, %v111
    %v129 = vpack.c.b16 %v114, %v113
    %v130 = vpack.c.b16 %v116, %v115
    %v131 = vpack.c.b16 %v118, %v117
    %v132 = vpack.c.b16 %v120, %v119
    %vm145 = vcmask 523264
    %v147 = vsel %vm145, %v65, 0
    %v150 = vsel %vm145, %v67, 0
    %v153 = vsel %vm145, %v69, 0
    %155 = vmatpush.bf16.msra.mxu0 %v128
    %156 = vmatpush.bf16.msra.mxu0 %v127
    %157 = vmatpush.bf16.msra.mxu0 %v126
    %158 = vmatpush.bf16.msra.mxu0 %v125
    %159 = vmatpush.bf16.msra.mxu0 %v124
    %160 = vmatpush.bf16.msra.mxu0 %v123
    %161 = vmatpush.bf16.msra.mxu0 %v122
    %162 = vmatpush.bf16.msra.mxu0 %v121
    %163 = vmatmul.bf16.gmra.mxu0 %v64
    %v164 = vpop.f32.mrf.mxu0
    %v165 = vadd.f32 0.0, %v164
    %v166 = vpop.f32.mrf.mxu0
    %v167 = vadd.f32 0.0, %v166
    %168 = vmatmul.bf16.gmra.mxu0 %v66
    %v169 = vpop.f32.mrf.mxu0
    %v170 = vadd.f32 0.0, %v169
    %v171 = vpop.f32.mrf.mxu0
    %v172 = vadd.f32 0.0, %v171
    %173 = vmatmul.bf16.gmra.mxu0 %v68
    %v174 = vpop.f32.mrf.mxu0
    %v175 = vadd.f32 0.0, %v174
    %v176 = vpop.f32.mrf.mxu0
    %v177 = vadd.f32 0.0, %v176
    %178 = vdwg.mxu0
    %179 = vmatpush.bf16.msra.mxu0 0
    %180 = vmatpush.bf16.msra.mxu0 0
    %181 = vmatpush.bf16.msra.mxu0 0
    %182 = vmatpush.bf16.msra.mxu0 0
    %183 = vmatpush.bf16.msra.mxu0 %v132
    %184 = vmatpush.bf16.msra.mxu0 %v131
    %185 = vmatpush.bf16.msra.mxu0 %v130
    %186 = vmatpush.bf16.msra.mxu0 %v129
    %187 = vmatmul.bf16.gmra.mxu0 %v147
    %v188 = vpop.f32.mrf.mxu0
    %v189 = vadd.f32 %v165, %v188
    %v190 = vpop.f32.mrf.mxu0
    %v191 = vadd.f32 %v167, %v190
    %192 = vmatmul.bf16.gmra.mxu0 %v150
    %v193 = vpop.f32.mrf.mxu0
    %v194 = vadd.f32 %v170, %v193
    %v195 = vpop.f32.mrf.mxu0
    %v196 = vadd.f32 %v172, %v195
    %197 = vmatmul.bf16.gmra.mxu0 %v153
    %v198 = vpop.f32.mrf.mxu0
    %v199 = vadd.f32 %v175, %v198
    %v200 = vpop.f32.mrf.mxu0
    %v201 = vadd.f32 %v177, %v200
    %202 = vdwg.mxu0
    %v203 = vld [vmem:[%s2] sm:$0xff]
    %v204 = vld [vmem:[%s2 + $0x8] sm:$0xff]
    %v205 = vld [vmem:[%s2 + $0x10] sm:$0xff]
    %v206 = vadd.f32 %v189, %v203
    %v207 = vadd.f32 %v191, %v204
    %v208 = vadd.f32 %v194, %v205
    %v209 = vadd.f32 %v196, %v203
    %v210 = vadd.f32 %v199, %v204
    %v211 = vadd.f32 %v201, %v205
    %v212 = vpack.c.bf16 %v206, %v206
    %v213 = vpack.c.bf16 %v207, %v207
    %v214 = vpack.c.bf16 %v208, %v208
    %v215 = vpack.c.bf16 %v209, %v209
    %v216 = vpack.c.bf16 %v210, %v210
    %v217 = vpack.c.bf16 %v211, %v211
    %vm218 = vcmask 257024
    %219 = vst.msk [vmem:[#allocation2] sm:$0xf] %vm218, %v212
    %220 = vst.msk [vmem:[#allocation2 + $0x4] sm:$0xf] %vm218, %v213
    %221 = vst.msk [vmem:[#allocation2 + $0x8] sm:$0xf] %vm218, %v214
    %222 = vst.msk [vmem:[#allocation2 + $0xc] sm:$0xf] %vm218, %v215
    %223 = vst.msk [vmem:[#allocation2 + $0x10] sm:$0xf] %vm218, %v216
    %224 = vst.msk [vmem:[#allocation2 + $0x14] sm:$0xf] %vm218, %v217
    // Predicated region
    $region14: #{tpu_custom_call.1} parent=1 // pred_check
      _
    $region15: #{tpu_custom_call.1} parent=1 // pred_check_branch
      %226 = sbr.rel (0) target = $region17
    $region16: #{tpu_custom_call.1} parent=1 // pred_region
      %228 = vsyncadd [#allocation3], 0
      %s229 = sshll.u32 [#allocation2], 4
      %s230 = int_to_ptr.vmem [resolvable:$true] %s229
      %s231 = sshll.u32 %s3, 4
      %s232 = int_to_ptr.hbm [resolvable:$true] %s231
      %237 = dma.vmem_to_hbm [thread:$0]  %s230, 384, %s232, [#allocation3], 64, 64, 4
    $region17: #{tpu_custom_call.1} parent=1 // pred_fallthru
      _
    // Predicated region
    $region18: #{tpu_custom_call.1} parent=1 // pred_check
      _
    $region19: #{tpu_custom_call.1} parent=1 // pred_check_branch
      %239 = sbr.rel (0) target = $region21
    $region20: #{tpu_custom_call.1} parent=1 // pred_region
      %241 = dma.done [#allocation3], 384
    $region21: #{tpu_custom_call.1} parent=1 // pred_fallthru
      _
    %242 = vsyncpa [#allocation3], 1

</llo_original>
